<compile_context>
chip_gen: v7x
topology: tpu7x:2x2x1
jax: 0.10.0
libtpu: 0.0.40
codegen_flags: <defaults>
</compile_context>

<pallas_src>
import functools
import math

import jax
import jax.numpy as jnp
import numpy as np
from jax.experimental import pallas as pl
from jax.experimental.pallas import tpu as pltpu

EPS = 1e-8
MAX_NORM = 1.0 - 1e-6


def _atanh(x):
    # x is clamped to <= 1 - 1e-6 before this call, so the log form is safe.
    return 0.5 * jnp.log((1.0 + x) / (1.0 - x))


def _round_up(x, m):
    return ((x + m - 1) // m) * m


def _largest_divisor_leq(n, cap):
    for d in range(min(n, cap), 0, -1):
        if n % d == 0:
            return d
    return 1


# ---------------- wrapper-side weight preparation ----------------

def _build_w_selector(weight, W, Wo, stride, padding, owo_pad):
    """Channel-folded banded weight matrix for the W-direction taps.

    sel[kh, c*W + p, o*Wo + wo] = weight[o, c, kh, kw]
        iff p == wo*stride + kw - padding and 0 <= p < W, else 0.
    The W zero-padding is absorbed here, so the kernel only slices along H.
    The lane dim is zero-padded from O*Wo to owo_pad (multiple of tile_n).
    """
    O, C, K, _ = weight.shape
    p = jnp.arange(W)
    target = jnp.arange(Wo)[None, :] * stride + jnp.arange(K)[:, None] - padding  # (K, Wo)
    onehot = (p[:, None, None] == target[None, :, :]).astype(weight.dtype)        # (W, K, Wo)
    sel = jnp.einsum("ochk,pkv->hcpov", weight, onehot)                            # (K, C, W, O, Wo)
    sel = sel.reshape(K, C * W, O * Wo)
    if owo_pad > O * Wo:
        sel = jnp.pad(sel, ((0, 0), (0, 0), (0, owo_pad - O * Wo)))
    return sel


# ---------------- fused Pallas kernel ----------------

def _make_kernel(B_tile, Hp, Ho, K, stride, tile_n):

    def kernel(x_ref, sel_ref, o_ref, xt_ref, acc_ref):
        # x_ref  : (B_tile, Hp, C*W)   padded hyperbolic input
        # sel_ref: (K, C*W, tile_n)    channel-folded banded weights
        # o_ref  : (B_tile, Ho, tile_n)
        # xt_ref : VMEM scratch (B_tile, Hp, C*W) -- tangent-space activations
        # acc_ref: VMEM scratch (Ho, tile_n) f32  -- conv accumulator

        # ---- log_map(0, x): hoisted out of the column-tile axis ----
        @pl.when(pl.program_id(1) == 0)
        def _():
            x = x_ref[...]                                          # (B_tile, Hp, C*W)
            n = jnp.sqrt(jnp.sum(x * x, axis=1, keepdims=True))     # (B_tile, 1, C*W)
            dn = jnp.maximum(n, EPS)
            safe = jnp.minimum(dn, MAX_NORM)
            # one divide/atanh per reduced element, one broadcast multiply per element;
            # zero pad rows map to zero (exactly what conv zero-padding needs).
            xt_ref[...] = ((2.0 * _atanh(safe)) / dn) * x

        def lhs(b, kh):
            if stride == 1:
                return xt_ref[b, kh:kh + Ho, :]
            return xt_ref[b, pl.ds(kh, Ho, stride), :]

        # ---- conv: K shifted-window MXU matmuls with a C*W-deep contraction ----
        for b in range(B_tile):
            acc_ref[...] = jnp.dot(lhs(b, 0), sel_ref[0],
                                   preferred_element_type=jnp.float32)
            for kh in range(1, K):
                acc_ref[...] += jnp.dot(lhs(b, kh), sel_ref[kh],
                                        preferred_element_type=jnp.float32)

            # ---- exp_map(0, y): norm over Ho per (o, wo) column, hoisted scale ----
            acc = acc_ref[...]
            vn = jnp.maximum(jnp.sqrt(jnp.sum(acc * acc, axis=0, keepdims=True)), EPS)
            o_ref[b] = ((jnp.tanh(vn) / vn) * acc).astype(o_ref.dtype)

    return kernel


# ---------------- public wrapper ----------------

@functools.partial(jax.jit, static_argnames=("stride", "padding"))
def hyperbolic_conv2d(x_hyp, weight, stride=1, padding=0):
    """x_hyp: (B, C, H, W) NCHW float32; weight: (O, C, K, K) OIHW float32."""
    B, C, H, W = x_hyp.shape
    O, _, K, _ = weight.shape
    Hp = H + 2 * padding
    Ho = (Hp - K) // stride + 1
    Wo = (W + 2 * padding - K) // stride + 1
    CW = C * W
    OWo = O * Wo

    # Up to 8 batches per grid step (must divide B so no OOB batch rows).
    B_tile = _largest_divisor_leq(B, 8)

    # Lane-dense (multiple-of-128) output column tile, sized from a VMEM byte
    # budget so double-buffered blocks + scratches fit v7x's 64 MiB as well.
    vmem_budget = 24 * 1024 * 1024
    tile_n = min(512, _round_up(OWo, 128))
    while tile_n > 128:
        need = (2 * K * CW * tile_n          # sel block, double-buffered
                + 2 * B_tile * Ho * tile_n   # out block, double-buffered
                + 2 * B_tile * Hp * CW       # x block, double-buffered
                + B_tile * Hp * CW           # x_tan scratch
                + Ho * tile_n) * 4           # accumulator scratch
        if need <= vmem_budget:
            break
        tile_n -= 128
    owo_pad = _round_up(OWo, tile_n)
    n_col = owo_pad // tile_n

    # H zero-padding in the wrapper; lay x out as (B, Hp, C*W) so the lane dim
    # is C*W (denser VPU/EUP occupancy for log_map, and it is the matmul LHS).
    xs = jnp.pad(x_hyp, ((0, 0), (0, 0), (padding, padding), (0, 0)))
    xs = xs.transpose(0, 2, 1, 3).reshape(B, Hp, CW)

    sel = _build_w_selector(weight, W, Wo, stride, padding, owo_pad)   # (K, C*W, owo_pad)

    kernel = _make_kernel(B_tile, Hp, Ho, K, stride, tile_n)

    out_flat = pl.pallas_call(
        kernel,
        out_shape=jax.ShapeDtypeStruct((B, Ho, owo_pad), jnp.float32),
        grid=(B // B_tile, n_col),
        in_specs=[
            pl.BlockSpec((B_tile, Hp, CW), lambda i, j: (i, 0, 0)),
            pl.BlockSpec((K, CW, tile_n), lambda i, j: (0, 0, j)),
        ],
        out_specs=pl.BlockSpec((B_tile, Ho, tile_n), lambda i, j: (i, 0, j)),
        scratch_shapes=[
            pltpu.VMEM((B_tile, Hp, CW), jnp.float32),   # x_tan (persists across j)
            pltpu.VMEM((Ho, tile_n), jnp.float32),       # conv accumulator
        ],
        compiler_params=pltpu.CompilerParams(
            dimension_semantics=("parallel", "arbitrary"),
            vmem_limit_bytes=32 * 1024 * 1024),
    )(xs, sel)

    # (B, Ho, O*Wo) -> NCHW (B, O, Ho, Wo); single small XLA transpose at the end.
    out = out_flat[:, :, :OWo].reshape(B, Ho, O, Wo)
    return out.transpose(0, 2, 1, 3)


# ---------------- pure-JAX reference ----------------

def reference(x_hyp, weight, stride, padding):
    n = jnp.sqrt(jnp.sum(x_hyp * x_hyp, axis=2, keepdims=True))
    dn = jnp.maximum(n, EPS)
    x_tan = 2.0 * jnp.arctanh(jnp.minimum(dn, MAX_NORM)) * x_hyp / dn
    y = jax.lax.conv_general_dilated(
        x_tan, weight, window_strides=(stride, stride),
        padding=[(padding, padding), (padding, padding)],
        dimension_numbers=("NCHW", "OIHW", "NCHW"))
    m = jnp.maximum(jnp.sqrt(jnp.sum(y * y, axis=2, keepdims=True)), EPS)
    return jnp.tanh(m) * y / m


if __name__ == "__main__":
    B, C, H, W = 2, 4, 16, 16
    O, K, stride, padding = 8, 3, 1, 1

    key = jax.random.PRNGKey(0)
    kx, kw = jax.random.split(key)
    x = (0.1 * jax.random.normal(kx, (B, C, H, W))).astype(jnp.float32)
    # deterministic Conv2d weight init (kaiming-like scale, no bias)
    weight = (jax.random.normal(kw, (O, C, K, K)) /
              jnp.sqrt(C * K * K)).astype(jnp.float32)

    out = hyperbolic_conv2d(x, weight, stride=stride, padding=padding)
    out = jax.block_until_ready(out)

    ref = jax.block_until_ready(reference(x, weight, stride, padding))
    np.testing.assert_allclose(np.asarray(out), np.asarray(ref),
                               rtol=1e-4, atol=2e-5)
    print("KERNEL_OK")
</pallas_src>

<mosaic_0001>
module attributes {stable_mosaic.version = 11 : i64} {
  func.func @kernel(%arg0: i32, %arg1: i32, %arg2: memref<2x18x64xf32, #tpu.memory_space<vmem>>, %arg3: memref<3x64x128xf32, #tpu.memory_space<vmem>>, %arg4: memref<2x16x128xf32, #tpu.memory_space<vmem>>, %arg5: memref<2x18x64xf32, #tpu.memory_space<vmem>>, %arg6: memref<16x128xf32, #tpu.memory_space<vmem>>) attributes {dimension_semantics = [#tpu.dimension_semantics<parallel>, #tpu.dimension_semantics<arbitrary>], iteration_bounds = array<i64: 1, 1>, scalar_prefetch = 0 : i64, scratch_operands = 2 : i64, tpu.core_type = #tpu.core_type<tc>, window_params = [{transform_indices = @transform_0, window_bounds = array<i64: 2, 18, 64>}, {transform_indices = @transform_1, window_bounds = array<i64: 3, 64, 128>}, {transform_indices = @transform_2, window_bounds = array<i64: 2, 16, 128>}]} {
    %c0_i32 = arith.constant 0 : i32
    %0 = arith.cmpi eq, %arg1, %c0_i32 : i32
    %1 = arith.extui %0 : i1 to i32
    %c0_i32_0 = arith.constant 0 : i32
    %2 = arith.cmpi ne, %1, %c0_i32_0 : i32
    scf.if %2 {
      %c0_73 = arith.constant 0 : index
      %c0_74 = arith.constant 0 : index
      %c0_75 = arith.constant 0 : index
      %75 = vector.load %arg2[%c0_73, %c0_74, %c0_75] : memref<2x18x64xf32, #tpu.memory_space<vmem>>, vector<2x18x64xf32>
      %76 = arith.mulf %75, %75 : vector<2x18x64xf32>
      %cst_76 = arith.constant dense<0.000000e+00> : vector<2x64xf32>
      %77 = vector.multi_reduction <add>, %76, %cst_76 [1] : vector<2x18x64xf32> to vector<2x64xf32>
      %78 = vector.shape_cast %77 : vector<2x64xf32> to vector<2x1x64xf32>
      %79 = math.sqrt %78 : vector<2x1x64xf32>
      %cst_77 = arith.constant 9.99999993E-9 : f32
      %80 = vector.broadcast %cst_77 : f32 to vector<2x1x64xf32>
      %81 = arith.maximumf %79, %80 : vector<2x1x64xf32>
      %cst_78 = arith.constant 0.999998986 : f32
      %82 = vector.broadcast %cst_78 : f32 to vector<2x1x64xf32>
      %83 = arith.minimumf %81, %82 : vector<2x1x64xf32>
      %cst_79 = arith.constant 1.000000e+00 : f32
      %84 = vector.broadcast %cst_79 : f32 to vector<2x1x64xf32>
      %85 = arith.addf %84, %83 : vector<2x1x64xf32>
      %cst_80 = arith.constant 1.000000e+00 : f32
      %86 = vector.broadcast %cst_80 : f32 to vector<2x1x64xf32>
      %87 = arith.subf %86, %83 : vector<2x1x64xf32>
      %88 = arith.divf %85, %87 : vector<2x1x64xf32>
      %89 = math.log %88 : vector<2x1x64xf32>
      %cst_81 = arith.constant 5.000000e-01 : f32
      %90 = vector.broadcast %cst_81 : f32 to vector<2x1x64xf32>
      %91 = arith.mulf %90, %89 : vector<2x1x64xf32>
      %cst_82 = arith.constant 2.000000e+00 : f32
      %92 = vector.broadcast %cst_82 : f32 to vector<2x1x64xf32>
      %93 = arith.mulf %92, %91 : vector<2x1x64xf32>
      %94 = arith.divf %93, %81 : vector<2x1x64xf32>
      %95 = vector.broadcast %94 : vector<2x1x64xf32> to vector<2x18x64xf32>
      %96 = arith.mulf %95, %75 : vector<2x18x64xf32>
      %c0_83 = arith.constant 0 : index
      %c0_84 = arith.constant 0 : index
      %c0_85 = arith.constant 0 : index
      %97 = vector.load %arg5[%c0_83, %c0_84, %c0_85] : memref<2x18x64xf32, #tpu.memory_space<vmem>>, vector<2x18x64xf32>
      tpu.vector_store %arg5[%c0_83, %c0_84, %c0_85], %96 {strides = array<i32>} : memref<2x18x64xf32, #tpu.memory_space<vmem>>, vector<2x18x64xf32>,
    } else {
    }
    %c0 = arith.constant 0 : index
    %c0_1 = arith.constant 0 : index
    %c0_2 = arith.constant 0 : index
    %3 = vector.load %arg5[%c0, %c0_1, %c0_2] : memref<2x18x64xf32, #tpu.memory_space<vmem>>, vector<1x16x64xf32>
    %4 = vector.shape_cast %3 : vector<1x16x64xf32> to vector<16x64xf32>
    %c0_3 = arith.constant 0 : index
    %c0_4 = arith.constant 0 : index
    %c0_5 = arith.constant 0 : index
    %5 = vector.load %arg3[%c0_3, %c0_4, %c0_5] : memref<3x64x128xf32, #tpu.memory_space<vmem>>, vector<1x64x128xf32>
    %6 = vector.shape_cast %5 : vector<1x64x128xf32> to vector<64x128xf32>
    %cst = arith.constant dense<0.000000e+00> : vector<16x128xf32>
    %7 = tpu.matmul %4, %6, %cst {dimension_numbers = #tpu.dot_dimension_numbers<[1], [0], [0], [1], [0, 0, 1, 1], [], []>} : vector<16x64xf32>, vector<64x128xf32>, vector<16x128xf32> -> vector<16x128xf32>
    %c0_6 = arith.constant 0 : index
    %c0_7 = arith.constant 0 : index
    %8 = vector.load %arg6[%c0_6, %c0_7] : memref<16x128xf32, #tpu.memory_space<vmem>>, vector<16x128xf32>
    tpu.vector_store %arg6[%c0_6, %c0_7], %7 {strides = array<i32>} : memref<16x128xf32, #tpu.memory_space<vmem>>, vector<16x128xf32>,
    %c0_8 = arith.constant 0 : index
    %c0_9 = arith.constant 0 : index
    %9 = vector.load %arg6[%c0_8, %c0_9] : memref<16x128xf32, #tpu.memory_space<vmem>>, vector<16x128xf32>
    %c0_10 = arith.constant 0 : index
    %c1 = arith.constant 1 : index
    %c0_11 = arith.constant 0 : index
    %10 = vector.load %arg5[%c0_10, %c1, %c0_11] : memref<2x18x64xf32, #tpu.memory_space<vmem>>, vector<1x16x64xf32>
    %11 = vector.shape_cast %10 : vector<1x16x64xf32> to vector<16x64xf32>
    %c1_12 = arith.constant 1 : index
    %c0_13 = arith.constant 0 : index
    %c0_14 = arith.constant 0 : index
    %12 = vector.load %arg3[%c1_12, %c0_13, %c0_14] : memref<3x64x128xf32, #tpu.memory_space<vmem>>, vector<1x64x128xf32>
    %13 = vector.shape_cast %12 : vector<1x64x128xf32> to vector<64x128xf32>
    %cst_15 = arith.constant dense<0.000000e+00> : vector<16x128xf32>
    %14 = tpu.matmul %11, %13, %cst_15 {dimension_numbers = #tpu.dot_dimension_numbers<[1], [0], [0], [1], [0, 0, 1, 1], [], []>} : vector<16x64xf32>, vector<64x128xf32>, vector<16x128xf32> -> vector<16x128xf32>
    %15 = arith.addf %9, %14 : vector<16x128xf32>
    %c0_16 = arith.constant 0 : index
    %c0_17 = arith.constant 0 : index
    %16 = vector.load %arg6[%c0_16, %c0_17] : memref<16x128xf32, #tpu.memory_space<vmem>>, vector<16x128xf32>
    tpu.vector_store %arg6[%c0_16, %c0_17], %15 {strides = array<i32>} : memref<16x128xf32, #tpu.memory_space<vmem>>, vector<16x128xf32>,
    %c0_18 = arith.constant 0 : index
    %c0_19 = arith.constant 0 : index
    %17 = vector.load %arg6[%c0_18, %c0_19] : memref<16x128xf32, #tpu.memory_space<vmem>>, vector<16x128xf32>
    %c0_20 = arith.constant 0 : index
    %c2 = arith.constant 2 : index
    %c0_21 = arith.constant 0 : index
    %18 = vector.load %arg5[%c0_20, %c2, %c0_21] : memref<2x18x64xf32, #tpu.memory_space<vmem>>, vector<1x16x64xf32>
    %19 = vector.shape_cast %18 : vector<1x16x64xf32> to vector<16x64xf32>
    %c2_22 = arith.constant 2 : index
    %c0_23 = arith.constant 0 : index
    %c0_24 = arith.constant 0 : index
    %20 = vector.load %arg3[%c2_22, %c0_23, %c0_24] : memref<3x64x128xf32, #tpu.memory_space<vmem>>, vector<1x64x128xf32>
    %21 = vector.shape_cast %20 : vector<1x64x128xf32> to vector<64x128xf32>
    %cst_25 = arith.constant dense<0.000000e+00> : vector<16x128xf32>
    %22 = tpu.matmul %19, %21, %cst_25 {dimension_numbers = #tpu.dot_dimension_numbers<[1], [0], [0], [1], [0, 0, 1, 1], [], []>} : vector<16x64xf32>, vector<64x128xf32>, vector<16x128xf32> -> vector<16x128xf32>
    %23 = arith.addf %17, %22 : vector<16x128xf32>
    %c0_26 = arith.constant 0 : index
    %c0_27 = arith.constant 0 : index
    %24 = vector.load %arg6[%c0_26, %c0_27] : memref<16x128xf32, #tpu.memory_space<vmem>>, vector<16x128xf32>
    tpu.vector_store %arg6[%c0_26, %c0_27], %23 {strides = array<i32>} : memref<16x128xf32, #tpu.memory_space<vmem>>, vector<16x128xf32>,
    %c0_28 = arith.constant 0 : index
    %c0_29 = arith.constant 0 : index
    %25 = vector.load %arg6[%c0_28, %c0_29] : memref<16x128xf32, #tpu.memory_space<vmem>>, vector<16x128xf32>
    %26 = arith.mulf %25, %25 : vector<16x128xf32>
    %cst_30 = arith.constant dense<0.000000e+00> : vector<128xf32>
    %27 = vector.multi_reduction <add>, %26, %cst_30 [0] : vector<16x128xf32> to vector<128xf32>
    %28 = vector.shape_cast %27 : vector<128xf32> to vector<1x128xf32>
    %29 = math.sqrt %28 : vector<1x128xf32>
    %cst_31 = arith.constant 9.99999993E-9 : f32
    %30 = vector.broadcast %cst_31 : f32 to vector<1x128xf32>
    %31 = arith.maximumf %29, %30 : vector<1x128xf32>
    %32 = math.tanh %31 : vector<1x128xf32>
    %33 = arith.divf %32, %31 : vector<1x128xf32>
    %34 = vector.broadcast %33 : vector<1x128xf32> to vector<16x128xf32>
    %35 = arith.mulf %34, %25 : vector<16x128xf32>
    %c0_32 = arith.constant 0 : index
    %c0_33 = arith.constant 0 : index
    %c0_34 = arith.constant 0 : index
    %36 = vector.load %arg4[%c0_32, %c0_33, %c0_34] : memref<2x16x128xf32, #tpu.memory_space<vmem>>, vector<1x16x128xf32>
    %37 = vector.shape_cast %36 : vector<1x16x128xf32> to vector<16x128xf32>
    %38 = vector.shape_cast %35 : vector<16x128xf32> to vector<1x16x128xf32>
    tpu.vector_store %arg4[%c0_32, %c0_33, %c0_34], %38 {strides = array<i32>} : memref<2x16x128xf32, #tpu.memory_space<vmem>>, vector<1x16x128xf32>,
    %c1_35 = arith.constant 1 : index
    %c0_36 = arith.constant 0 : index
    %c0_37 = arith.constant 0 : index
    %39 = vector.load %arg5[%c1_35, %c0_36, %c0_37] : memref<2x18x64xf32, #tpu.memory_space<vmem>>, vector<1x16x64xf32>
    %40 = vector.shape_cast %39 : vector<1x16x64xf32> to vector<16x64xf32>
    %c0_38 = arith.constant 0 : index
    %c0_39 = arith.constant 0 : index
    %c0_40 = arith.constant 0 : index
    %41 = vector.load %arg3[%c0_38, %c0_39, %c0_40] : memref<3x64x128xf32, #tpu.memory_space<vmem>>, vector<1x64x128xf32>
    %42 = vector.shape_cast %41 : vector<1x64x128xf32> to vector<64x128xf32>
    %cst_41 = arith.constant dense<0.000000e+00> : vector<16x128xf32>
    %43 = tpu.matmul %40, %42, %cst_41 {dimension_numbers = #tpu.dot_dimension_numbers<[1], [0], [0], [1], [0, 0, 1, 1], [], []>} : vector<16x64xf32>, vector<64x128xf32>, vector<16x128xf32> -> vector<16x128xf32>
    %c0_42 = arith.constant 0 : index
    %c0_43 = arith.constant 0 : index
    %44 = vector.load %arg6[%c0_42, %c0_43] : memref<16x128xf32, #tpu.memory_space<vmem>>, vector<16x128xf32>
    tpu.vector_store %arg6[%c0_42, %c0_43], %43 {strides = array<i32>} : memref<16x128xf32, #tpu.memory_space<vmem>>, vector<16x128xf32>,
    %c0_44 = arith.constant 0 : index
    %c0_45 = arith.constant 0 : index
    %45 = vector.load %arg6[%c0_44, %c0_45] : memref<16x128xf32, #tpu.memory_space<vmem>>, vector<16x128xf32>
    %c1_46 = arith.constant 1 : index
    %c1_47 = arith.constant 1 : index
    %c0_48 = arith.constant 0 : index
    %46 = vector.load %arg5[%c1_46, %c1_47, %c0_48] : memref<2x18x64xf32, #tpu.memory_space<vmem>>, vector<1x16x64xf32>
    %47 = vector.shape_cast %46 : vector<1x16x64xf32> to vector<16x64xf32>
    %c1_49 = arith.constant 1 : index
    %c0_50 = arith.constant 0 : index
    %c0_51 = arith.constant 0 : index
    %48 = vector.load %arg3[%c1_49, %c0_50, %c0_51] : memref<3x64x128xf32, #tpu.memory_space<vmem>>, vector<1x64x128xf32>
    %49 = vector.shape_cast %48 : vector<1x64x128xf32> to vector<64x128xf32>
    %cst_52 = arith.constant dense<0.000000e+00> : vector<16x128xf32>
    %50 = tpu.matmul %47, %49, %cst_52 {dimension_numbers = #tpu.dot_dimension_numbers<[1], [0], [0], [1], [0, 0, 1, 1], [], []>} : vector<16x64xf32>, vector<64x128xf32>, vector<16x128xf32> -> vector<16x128xf32>
    %51 = arith.addf %45, %50 : vector<16x128xf32>
    %c0_53 = arith.constant 0 : index
    %c0_54 = arith.constant 0 : index
    %52 = vector.load %arg6[%c0_53, %c0_54] : memref<16x128xf32, #tpu.memory_space<vmem>>, vector<16x128xf32>
    tpu.vector_store %arg6[%c0_53, %c0_54], %51 {strides = array<i32>} : memref<16x128xf32, #tpu.memory_space<vmem>>, vector<16x128xf32>,
    %c0_55 = arith.constant 0 : index
    %c0_56 = arith.constant 0 : index
    %53 = vector.load %arg6[%c0_55, %c0_56] : memref<16x128xf32, #tpu.memory_space<vmem>>, vector<16x128xf32>
    %c1_57 = arith.constant 1 : index
    %c2_58 = arith.constant 2 : index
    %c0_59 = arith.constant 0 : index
    %54 = vector.load %arg5[%c1_57, %c2_58, %c0_59] : memref<2x18x64xf32, #tpu.memory_space<vmem>>, vector<1x16x64xf32>
    %55 = vector.shape_cast %54 : vector<1x16x64xf32> to vector<16x64xf32>
    %c2_60 = arith.constant 2 : index
    %c0_61 = arith.constant 0 : index
    %c0_62 = arith.constant 0 : index
    %56 = vector.load %arg3[%c2_60, %c0_61, %c0_62] : memref<3x64x128xf32, #tpu.memory_space<vmem>>, vector<1x64x128xf32>
    %57 = vector.shape_cast %56 : vector<1x64x128xf32> to vector<64x128xf32>
    %cst_63 = arith.constant dense<0.000000e+00> : vector<16x128xf32>
    %58 = tpu.matmul %55, %57, %cst_63 {dimension_numbers = #tpu.dot_dimension_numbers<[1], [0], [0], [1], [0, 0, 1, 1], [], []>} : vector<16x64xf32>, vector<64x128xf32>, vector<16x128xf32> -> vector<16x128xf32>
    %59 = arith.addf %53, %58 : vector<16x128xf32>
    %c0_64 = arith.constant 0 : index
    %c0_65 = arith.constant 0 : index
    %60 = vector.load %arg6[%c0_64, %c0_65] : memref<16x128xf32, #tpu.memory_space<vmem>>, vector<16x128xf32>
    tpu.vector_store %arg6[%c0_64, %c0_65], %59 {strides = array<i32>} : memref<16x128xf32, #tpu.memory_space<vmem>>, vector<16x128xf32>,
    %c0_66 = arith.constant 0 : index
    %c0_67 = arith.constant 0 : index
    %61 = vector.load %arg6[%c0_66, %c0_67] : memref<16x128xf32, #tpu.memory_space<vmem>>, vector<16x128xf32>
    %62 = arith.mulf %61, %61 : vector<16x128xf32>
    %cst_68 = arith.constant dense<0.000000e+00> : vector<128xf32>
    %63 = vector.multi_reduction <add>, %62, %cst_68 [0] : vector<16x128xf32> to vector<128xf32>
    %64 = vector.shape_cast %63 : vector<128xf32> to vector<1x128xf32>
    %65 = math.sqrt %64 : vector<1x128xf32>
    %cst_69 = arith.constant 9.99999993E-9 : f32
    %66 = vector.broadcast %cst_69 : f32 to vector<1x128xf32>
    %67 = arith.maximumf %65, %66 : vector<1x128xf32>
    %68 = math.tanh %67 : vector<1x128xf32>
    %69 = arith.divf %68, %67 : vector<1x128xf32>
    %70 = vector.broadcast %69 : vector<1x128xf32> to vector<16x128xf32>
    %71 = arith.mulf %70, %61 : vector<16x128xf32>
    %c1_70 = arith.constant 1 : index
    %c0_71 = arith.constant 0 : index
    %c0_72 = arith.constant 0 : index
    %72 = vector.load %arg4[%c1_70, %c0_71, %c0_72] : memref<2x16x128xf32, #tpu.memory_space<vmem>>, vector<1x16x128xf32>
    %73 = vector.shape_cast %72 : vector<1x16x128xf32> to vector<16x128xf32>
    %74 = vector.shape_cast %71 : vector<16x128xf32> to vector<1x16x128xf32>
    tpu.vector_store %arg4[%c1_70, %c0_71, %c0_72], %74 {strides = array<i32>} : memref<2x16x128xf32, #tpu.memory_space<vmem>>, vector<1x16x128xf32>,
    return
  }
  func.func @transform_0(%arg0: i32, %arg1: i32) -> (i32, i32, i32) {
    %c0_i32 = arith.constant 0 : i32
    %c0_i32_0 = arith.constant 0 : i32
    %c0_i32_1 = arith.constant 0 : i32
    return %arg0, %c0_i32, %c0_i32_0 : i32, i32, i32
  }
  func.func @transform_1(%arg0: i32, %arg1: i32) -> (i32, i32, i32) {
    %c0_i32 = arith.constant 0 : i32
    %c0_i32_0 = arith.constant 0 : i32
    %c0_i32_1 = arith.constant 0 : i32
    return %c0_i32, %c0_i32_0, %arg1 : i32, i32, i32
  }
  func.func @transform_2(%arg0: i32, %arg1: i32) -> (i32, i32, i32) {
    %c0_i32 = arith.constant 0 : i32
    %c0_i32_0 = arith.constant 0 : i32
    return %arg0, %c0_i32, %arg1 : i32, i32, i32
  }
}

</mosaic_0001>

<llo_original>
// kernel: hyperbolic_conv2d.1
$region0: #{hyperbolic_conv2d.1}
  #allocation0 [shape = 'u32[]', space=smem, size = 0x4, offset = 0x4, fixed_abs, tag = 'smem constant byte address 0x4 - core index']
  #allocation1 [shape = 'u32[144,128]{1,0:T(1,128)}', space=vmem, size = 0x12000, scoped, tag = 'internal scratch']
  #allocation2 [shape = 'f32[2,18,64]{2,1,0:T(8,128)}', space=vmem, size = 0x6000, scoped, tag = 'scratch operand']
  #allocation3 [shape = 'f32[16,128]{1,0:T(8,128)}', space=vmem, size = 0x2000, scoped, tag = 'scratch operand']
  %s0 = inlined_call_operand.vmem [shape: f32[2,18,64], index: 0, kind: input, shape index: {}]
  %s1 = inlined_call_operand.vmem [shape: f32[3,64,128], index: 1, kind: input, shape index: {}]
  %s2 = inlined_call_operand.vmem [shape: f32[2,16,128], index: 2, kind: output, shape index: {}]
  %s3 = sld [smem:[#allocation0]]
  $region22: #{hyperbolic_conv2d.1} parent=0
    _
  %s5 = ssub.s32 1, %s3
  %s6 = scalar_select 0, %s5, %s3
  // Predicated region
  $region2: #{hyperbolic_conv2d.1} parent=0 // pred_check
    _
  $region3: #{hyperbolic_conv2d.1} parent=0 // pred_check_branch
    %8 = sbr.rel (0) target = $region5
  $region4: #{hyperbolic_conv2d.1} parent=0 // pred_region
    _
  $region5: #{hyperbolic_conv2d.1} parent=0 // pred_fallthru
    _
  // Predicated region
  $region6: #{hyperbolic_conv2d.1} parent=0 // pred_check
    _
  $region7: #{hyperbolic_conv2d.1} parent=0 // pred_check_branch
    %10 = sbr.rel (0) target = $region9
  $region8: #{hyperbolic_conv2d.1} parent=0 // pred_region
    _
  $region9: #{hyperbolic_conv2d.1} parent=0 // pred_fallthru
    _
  %p11 = scmp.eq.s32.totalorder 0, 0
  // Predicated region
  $region10: #{hyperbolic_conv2d.1} parent=0 // pred_check
    %p12 = pneg %p11
  $region11: #{hyperbolic_conv2d.1} parent=0 // pred_check_branch
    %14 = sbr.rel (%p12) target = $region13
  $region12: #{hyperbolic_conv2d.1} parent=0 // pred_region
    %v15 = vld [vmem:[%s0] sm:$0xff]
    %v16 = vld [vmem:[%s0 + $0x8] sm:$0xff]
    %v17 = vld [vmem:[%s0 + $0x10] sm:$0x3]
    %v18 = vld [vmem:[%s0 + $0x18] sm:$0xff]
    %v19 = vld [vmem:[%s0 + $0x20] sm:$0xff]
    %v20 = vld [vmem:[%s0 + $0x28] sm:$0x3]
    %v21 = vmul.f32 %v15, %v15
    %v22 = vmul.f32 %v16, %v16
    %v23 = vmul.f32 %v17, %v17
    %v24 = vmul.f32 %v18, %v18
    %v25 = vmul.f32 %v19, %v19
    %v26 = vmul.f32 %v20, %v20
    %vm27 = vcmask 523264
    %v28 = vsel %vm27, %v21, 0.0
    %v29 = vsel %vm27, %v22, 0.0
    %v30 = vadd.f32 %v28, %v29
    %vm31 = vcmask 517120
    %v32 = vsel %vm31, %v23, 0.0
    %v33 = vadd.f32 %v30, %v32
    %v34 = vrot.slane %v33, 4
    %v35 = vadd.f32 %v33, %v34
    %v36 = vrot.slane %v35, 2
    %v37 = vadd.f32 %v35, %v36
    %v38 = vrot.slane %v37, 1
    %v39 = vadd.f32 %v37, %v38
    %v40 = vsel %vm27, %v24, 0.0
    %v41 = vsel %vm27, %v25, 0.0
    %v42 = vadd.f32 %v40, %v41
    %v43 = vsel %vm31, %v26, 0.0
    %v44 = vadd.f32 %v42, %v43
    %v45 = vrot.slane %v44, 4
    %v46 = vadd.f32 %v44, %v45
    %v47 = vrot.slane %v46, 2
    %v48 = vadd.f32 %v46, %v47
    %v49 = vrot.slane %v48, 1
    %v50 = vadd.f32 %v48, %v49
    %v51 = vrsqrt.pop %v39
    %v52 = vmul.f32 %v39, %v51
    %vm53 = vcmp.eq.f32.partialorder %v39, inf
    %v54 = vsel %vm53, %v39, %v52
    %vm55 = vcmp.eq.f32.partialorder %v39, 0.0
    %v56 = vand.u32 %v39, 2147483648
    %v57 = vsel %vm55, %v56, %v54
    %v58 = vrsqrt.pop %v50
    %v59 = vmul.f32 %v50, %v58
    %vm60 = vcmp.eq.f32.partialorder %v50, inf
    %v61 = vsel %vm60, %v50, %v59
    %vm62 = vcmp.eq.f32.partialorder %v50, 0.0
    %v63 = vand.u32 %v50, 2147483648
    %v64 = vsel %vm62, %v63, %v61
    %v65 = vmax.f32 %v57, 1e-08
    %v66 = vmax.f32 %v64, 1e-08
    %v67 = vmin.f32 %v65, 0.999999
    %v68 = vmin.f32 %v66, 0.999999
    %v69 = vadd.f32 %v67, 1.0
    %v70 = vadd.f32 %v68, 1.0
    %v71 = vsub.f32 1.0, %v67
    %v72 = vsub.f32 1.0, %v68
    %v73 = vrcp.pop %v71
    %v74 = vmul.f32 %v69, %v73
    %v75 = vrcp.pop %v72
    %v76 = vmul.f32 %v70, %v75
    %v77 = vlog2.pop %v74
    %v78 = vmul.f32 %v77, 0.6931472
    %v79 = vlog2.pop %v76
    %v80 = vmul.f32 %v79, 0.6931472
    %v81 = vmul.f32 %v78, 0.5
    %v82 = vmul.f32 %v80, 0.5
    %v83 = vmul.f32 %v81, 2.0
    %v84 = vmul.f32 %v82, 2.0
    %v85 = vrcp.pop %v65
    %v86 = vmul.f32 %v83, %v85
    %v87 = vrcp.pop %v66
    %v88 = vmul.f32 %v84, %v87
    %v89 = vmul.f32 %v86, %v15
    %v90 = vmul.f32 %v86, %v16
    %v91 = vmul.f32 %v86, %v17
    %v92 = vmul.f32 %v88, %v18
    %v93 = vmul.f32 %v88, %v19
    %v94 = vmul.f32 %v88, %v20
    %95 = vst.msk [vmem:[#allocation2] sm:$0xff] %vm27, %v89
    %96 = vst.msk [vmem:[#allocation2 + $0x8] sm:$0xff] %vm27, %v90
    %97 = vst.msk [vmem:[#allocation2 + $0x10] sm:$0x3] %vm31, %v91
    %98 = vst.msk [vmem:[#allocation2 + $0x18] sm:$0xff] %vm27, %v92
    %99 = vst.msk [vmem:[#allocation2 + $0x20] sm:$0xff] %vm27, %v93
    %100 = vst.msk [vmem:[#allocation2 + $0x28] sm:$0x3] %vm31, %v94
  $region13: #{hyperbolic_conv2d.1} parent=0 // pred_fallthru
    _
  %v101 = vld [vmem:[#allocation2] sm:$0xff]
  %v102 = vld [vmem:[#allocation2 + $0x8] sm:$0xff]
  %v103 = vld [vmem:[%s1] sm:$0xff]
  %v104 = vld [vmem:[%s1 + $0x8] sm:$0xff]
  %v105 = vld [vmem:[%s1 + $0x10] sm:$0xff]
  %v106 = vld [vmem:[%s1 + $0x18] sm:$0xff]
  %v107 = vld [vmem:[%s1 + $0x20] sm:$0xff]
  %v108 = vld [vmem:[%s1 + $0x28] sm:$0xff]
  %v109 = vld [vmem:[%s1 + $0x30] sm:$0xff]
  %v110 = vld [vmem:[%s1 + $0x38] sm:$0xff]
  %vm111 = vcmask 523264
  %v113 = vsel %vm111, %v101, 0
  %v116 = vsel %vm111, %v102, 0
  %118 = vmatprep.subr.mxu0 0.0
  %119 = vmatpush1.msra.mxu0 %v103
  %120 = vmatprep.subr.mxu0 0.0
  %121 = vmatpush1.msra.mxu0 %v104
  %122 = vmatprep.subr.mxu0 0.0
  %123 = vmatpush1.msra.mxu0 %v105
  %124 = vmatprep.subr.mxu0 0.0
  %125 = vmatpush1.msra.mxu0 %v106
  %126 = vmatprep.subr.mxu0 0.0
  %127 = vmatpush1.msra.mxu0 %v107
  %128 = vmatprep.subr.mxu0 0.0
  %129 = vmatpush1.msra.mxu0 %v108
  %130 = vmatprep.subr.mxu0 0.0
  %131 = vmatpush1.msra.mxu0 %v109
  %132 = vmatprep.subr.mxu0 0.0
  %133 = vmatpush1.msra.mxu0 %v110
  %134 = vmatprep.subr.mxu0 0.0
  %135 = vmatpush1.msra.mxu0 0.0
  %136 = vmatprep.subr.mxu0 0.0
  %137 = vmatpush1.msra.mxu0 0.0
  %138 = vmatprep.subr.mxu0 0.0
  %139 = vmatpush1.msra.mxu0 0.0
  %140 = vmatprep.subr.mxu0 0.0
  %141 = vmatpush1.msra.mxu0 0.0
  %142 = vmatprep.subr.mxu0 0.0
  %143 = vmatpush1.msra.mxu0 0.0
  %144 = vmatprep.subr.mxu0 0.0
  %145 = vmatpush1.msra.mxu0 0.0
  %146 = vmatprep.subr.mxu0 0.0
  %147 = vmatpush1.msra.mxu0 0.0
  %148 = vmatprep.subr.mxu0 0.0
  %149 = vmatpush1.msra.mxu0 0.0
  %150 = vmatprep.subr.mxu0 0.0
  %151 = vmatpush1.msra.mxu0 0.0
  %152 = vmatprep.subr.mxu0 0.0
  %153 = vmatpush1.msra.mxu0 0.0
  %154 = vmatprep.subr.mxu0 0.0
  %155 = vmatpush1.msra.mxu0 0.0
  %156 = vmatprep.subr.mxu0 0.0
  %157 = vmatpush1.msra.mxu0 0.0
  %158 = vmatprep.subr.mxu0 0.0
  %159 = vmatpush1.msra.mxu0 0.0
  %160 = vmatprep.subr.mxu0 0.0
  %161 = vmatpush1.msra.mxu0 0.0
  %162 = vmatprep.subr.mxu0 0.0
  %163 = vmatpush1.msra.mxu0 0.0
  %164 = vmatprep.subr.mxu0 0.0
  %165 = vmatpush1.msra.mxu0 0.0
  %166 = vmatprep.subr.mxu0 0.0
  %167 = vmatpush1.msra.mxu0 0.0
  %168 = vmatprep.subr.mxu0 0.0
  %169 = vmatpush1.msra.mxu0 0.0
  %170 = vmatprep.subr.mxu0 0.0
  %171 = vmatpush1.msra.mxu0 0.0
  %172 = vmatprep.subr.mxu0 0.0
  %173 = vmatpush1.msra.mxu0 0.0
  %174 = vmatprep.subr.mxu0 0.0
  %175 = vmatpush1.msra.mxu0 0.0
  %176 = vmatprep.subr.mxu0 0.0
  %177 = vmatpush1.msra.mxu0 0.0
  %178 = vmatprep.subr.mxu0 0.0
  %179 = vmatpush1.msra.mxu0 0.0
  %180 = vmatprep.subr.mxu0 0.0
  %181 = vmatpush1.msra.mxu0 0.0
  %182 = vmatprep.mubr.f32.mxu0 0.0
  %183 = vmatmul.mubr.f32.gmra.mrb[0].mxu0 %v113
  %v184 = vpop.f32.mrb[0].mxu0
  %v185 = vadd.f32 0.0, %v184
  %v186 = vpop.f32.mrb[0].mxu0
  %187 = vmatprep.mubr.f32.mxu0 0.0
  %188 = vmatmul.mubr.f32.gmra.mrb[0].mxu0 %v116
  %v189 = vpop.f32.mrb[0].mxu0
  %v190 = vadd.f32 0.0, %v189
  %v191 = vpop.f32.mrb[0].mxu0
  %192 = vdwg.mxu0
  %193 = vst [vmem:[#allocation3] sm:$0xff] %v185
  %194 = vst [vmem:[#allocation3 + $0x8] sm:$0xff] %v190
  %v195 = vld [vmem:[#allocation3] sm:$0xff]
  %v196 = vld [vmem:[#allocation3 + $0x8] sm:$0xff]
  %v197 = vld [vmem:[#allocation2 + $0x1] sm:$0xff]
  %v198 = vld [vmem:[#allocation2 + $0x9] sm:$0xff]
  %s199 = scalar_lea.vmem %s1, 64
  %v200 = vld [vmem:[%s199] sm:$0xff]
  %v201 = vld [vmem:[%s199 + $0x8] sm:$0xff]
  %v202 = vld [vmem:[%s199 + $0x10] sm:$0xff]
  %v203 = vld [vmem:[%s199 + $0x18] sm:$0xff]
  %v204 = vld [vmem:[%s199 + $0x20] sm:$0xff]
  %v205 = vld [vmem:[%s199 + $0x28] sm:$0xff]
  %v206 = vld [vmem:[%s199 + $0x30] sm:$0xff]
  %v207 = vld [vmem:[%s199 + $0x38] sm:$0xff]
  %v209 = vsel %vm111, %v197, 0
  %v212 = vsel %vm111, %v198, 0
  %214 = vmatprep.subr.mxu0 0.0
  %215 = vmatpush1.msra.mxu0 %v200
  %216 = vmatprep.subr.mxu0 0.0
  %217 = vmatpush1.msra.mxu0 %v201
  %218 = vmatprep.subr.mxu0 0.0
  %219 = vmatpush1.msra.mxu0 %v202
  %220 = vmatprep.subr.mxu0 0.0
  %221 = vmatpush1.msra.mxu0 %v203
  %222 = vmatprep.subr.mxu0 0.0
  %223 = vmatpush1.msra.mxu0 %v204
  %224 = vmatprep.subr.mxu0 0.0
  %225 = vmatpush1.msra.mxu0 %v205
  %226 = vmatprep.subr.mxu0 0.0
  %227 = vmatpush1.msra.mxu0 %v206
  %228 = vmatprep.subr.mxu0 0.0
  %229 = vmatpush1.msra.mxu0 %v207
  %230 = vmatprep.subr.mxu0 0.0
  %231 = vmatpush1.msra.mxu0 0.0
  %232 = vmatprep.subr.mxu0 0.0
  %233 = vmatpush1.msra.mxu0 0.0
  %234 = vmatprep.subr.mxu0 0.0
  %235 = vmatpush1.msra.mxu0 0.0
  %236 = vmatprep.subr.mxu0 0.0
  %237 = vmatpush1.msra.mxu0 0.0
  %238 = vmatprep.subr.mxu0 0.0
  %239 = vmatpush1.msra.mxu0 0.0
  %240 = vmatprep.subr.mxu0 0.0
  %241 = vmatpush1.msra.mxu0 0.0
  %242 = vmatprep.subr.mxu0 0.0
  %243 = vmatpush1.msra.mxu0 0.0
  %244 = vmatprep.subr.mxu0 0.0
  %245 = vmatpush1.msra.mxu0 0.0
  %246 = vmatprep.subr.mxu0 0.0
  %247 = vmatpush1.msra.mxu0 0.0
  %248 = vmatprep.subr.mxu0 0.0
  %249 = vmatpush1.msra.mxu0 0.0
  %250 = vmatprep.subr.mxu0 0.0
  %251 = vmatpush1.msra.mxu0 0.0
  %252 = vmatprep.subr.mxu0 0.0
  %253 = vmatpush1.msra.mxu0 0.0
  %254 = vmatprep.subr.mxu0 0.0
  %255 = vmatpush1.msra.mxu0 0.0
  %256 = vmatprep.subr.mxu0 0.0
  %257 = vmatpush1.msra.mxu0 0.0
  %258 = vmatprep.subr.mxu0 0.0
  %259 = vmatpush1.msra.mxu0 0.0
  %260 = vmatprep.subr.mxu0 0.0
  %261 = vmatpush1.msra.mxu0 0.0
  %262 = vmatprep.subr.mxu0 0.0
  %263 = vmatpush1.msra.mxu0 0.0
  %264 = vmatprep.subr.mxu0 0.0
  %265 = vmatpush1.msra.mxu0 0.0
  %266 = vmatprep.subr.mxu0 0.0
  %267 = vmatpush1.msra.mxu0 0.0
  %268 = vmatprep.subr.mxu0 0.0
  %269 = vmatpush1.msra.mxu0 0.0
  %270 = vmatprep.subr.mxu0 0.0
  %271 = vmatpush1.msra.mxu0 0.0
  %272 = vmatprep.subr.mxu0 0.0
  %273 = vmatpush1.msra.mxu0 0.0
  %274 = vmatprep.subr.mxu0 0.0
  %275 = vmatpush1.msra.mxu0 0.0
  %276 = vmatprep.subr.mxu0 0.0
  %277 = vmatpush1.msra.mxu0 0.0
  %278 = vmatprep.mubr.f32.mxu0 0.0
  %279 = vmatmul.mubr.f32.gmra.mrb[0].mxu0 %v209
  %v280 = vpop.f32.mrb[0].mxu0
  %v281 = vadd.f32 0.0, %v280
  %v282 = vpop.f32.mrb[0].mxu0
  %283 = vmatprep.mubr.f32.mxu0 0.0
  %284 = vmatmul.mubr.f32.gmra.mrb[0].mxu0 %v212
  %v285 = vpop.f32.mrb[0].mxu0
  %v286 = vadd.f32 0.0, %v285
  %v287 = vpop.f32.mrb[0].mxu0
  %288 = vdwg.mxu0
  %v289 = vadd.f32 %v195, %v281
  %v290 = vadd.f32 %v196, %v286
  %291 = vst [vmem:[#allocation3] sm:$0xff] %v289
  %292 = vst [vmem:[#allocation3 + $0x8] sm:$0xff] %v290
  %v293 = vld [vmem:[#allocation3] sm:$0xff]
  %v294 = vld [vmem:[#allocation3 + $0x8] sm:$0xff]
  %v295 = vld [vmem:[#allocation2 + $0x2] sm:$0xff]
  %v296 = vld [vmem:[#allocation2 + $0xa] sm:$0xff]
  %s297 = scalar_lea.vmem %s1, 128
  %v298 = vld [vmem:[%s297] sm:$0xff]
  %v299 = vld [vmem:[%s297 + $0x8] sm:$0xff]
  %v300 = vld [vmem:[%s297 + $0x10] sm:$0xff]
  %v301 = vld [vmem:[%s297 + $0x18] sm:$0xff]
  %v302 = vld [vmem:[%s297 + $0x20] sm:$0xff]
  %v303 = vld [vmem:[%s297 + $0x28] sm:$0xff]
  %v304 = vld [vmem:[%s297 + $0x30] sm:$0xff]
  %v305 = vld [vmem:[%s297 + $0x38] sm:$0xff]
  %v307 = vsel %vm111, %v295, 0
  %v310 = vsel %vm111, %v296, 0
  %312 = vmatprep.subr.mxu0 0.0
  %313 = vmatpush1.msra.mxu0 %v298
  %314 = vmatprep.subr.mxu0 0.0
  %315 = vmatpush1.msra.mxu0 %v299
  %316 = vmatprep.subr.mxu0 0.0
  %317 = vmatpush1.msra.mxu0 %v300
  %318 = vmatprep.subr.mxu0 0.0
  %319 = vmatpush1.msra.mxu0 %v301
  %320 = vmatprep.subr.mxu0 0.0
  %321 = vmatpush1.msra.mxu0 %v302
  %322 = vmatprep.subr.mxu0 0.0
  %323 = vmatpush1.msra.mxu0 %v303
  %324 = vmatprep.subr.mxu0 0.0
  %325 = vmatpush1.msra.mxu0 %v304
  %326 = vmatprep.subr.mxu0 0.0
  %327 = vmatpush1.msra.mxu0 %v305
  %328 = vmatprep.subr.mxu0 0.0
  %329 = vmatpush1.msra.mxu0 0.0
  %330 = vmatprep.subr.mxu0 0.0
  %331 = vmatpush1.msra.mxu0 0.0
  %332 = vmatprep.subr.mxu0 0.0
  %333 = vmatpush1.msra.mxu0 0.0
  %334 = vmatprep.subr.mxu0 0.0
  %335 = vmatpush1.msra.mxu0 0.0
  %336 = vmatprep.subr.mxu0 0.0
  %337 = vmatpush1.msra.mxu0 0.0
  %338 = vmatprep.subr.mxu0 0.0
  %339 = vmatpush1.msra.mxu0 0.0
  %340 = vmatprep.subr.mxu0 0.0
  %341 = vmatpush1.msra.mxu0 0.0
  %342 = vmatprep.subr.mxu0 0.0
  %343 = vmatpush1.msra.mxu0 0.0
  %344 = vmatprep.subr.mxu0 0.0
  %345 = vmatpush1.msra.mxu0 0.0
  %346 = vmatprep.subr.mxu0 0.0
  %347 = vmatpush1.msra.mxu0 0.0
  %348 = vmatprep.subr.mxu0 0.0
  %349 = vmatpush1.msra.mxu0 0.0
  %350 = vmatprep.subr.mxu0 0.0
  %351 = vmatpush1.msra.mxu0 0.0
  %352 = vmatprep.subr.mxu0 0.0
  %353 = vmatpush1.msra.mxu0 0.0
  %354 = vmatprep.subr.mxu0 0.0
  %355 = vmatpush1.msra.mxu0 0.0
  %356 = vmatprep.subr.mxu0 0.0
  %357 = vmatpush1.msra.mxu0 0.0
  %358 = vmatprep.subr.mxu0 0.0
  %359 = vmatpush1.msra.mxu0 0.0
  %360 = vmatprep.subr.mxu0 0.0
  %361 = vmatpush1.msra.mxu0 0.0
  %362 = vmatprep.subr.mxu0 0.0
  %363 = vmatpush1.msra.mxu0 0.0
  %364 = vmatprep.subr.mxu0 0.0
  %365 = vmatpush1.msra.mxu0 0.0
  %366 = vmatprep.subr.mxu0 0.0
  %367 = vmatpush1.msra.mxu0 0.0
  %368 = vmatprep.subr.mxu0 0.0
  %369 = vmatpush1.msra.mxu0 0.0
  %370 = vmatprep.subr.mxu0 0.0
  %371 = vmatpush1.msra.mxu0 0.0
  %372 = vmatprep.subr.mxu0 0.0
  %373 = vmatpush1.msra.mxu0 0.0
  %374 = vmatprep.subr.mxu0 0.0
  %375 = vmatpush1.msra.mxu0 0.0
  %376 = vmatprep.mubr.f32.mxu0 0.0
  %377 = vmatmul.mubr.f32.gmra.mrb[0].mxu0 %v307
  %v378 = vpop.f32.mrb[0].mxu0
  %v379 = vadd.f32 0.0, %v378
  %v380 = vpop.f32.mrb[0].mxu0
  %381 = vmatprep.mubr.f32.mxu0 0.0
  %382 = vmatmul.mubr.f32.gmra.mrb[0].mxu0 %v310
  %v383 = vpop.f32.mrb[0].mxu0
  %v384 = vadd.f32 0.0, %v383
  %v385 = vpop.f32.mrb[0].mxu0
  %386 = vdwg.mxu0
  %v387 = vadd.f32 %v293, %v379
  %v388 = vadd.f32 %v294, %v384
  %389 = vst [vmem:[#allocation3] sm:$0xff] %v387
  %390 = vst [vmem:[#allocation3 + $0x8] sm:$0xff] %v388
  %v391 = vld [vmem:[#allocation3] sm:$0xff]
  %v392 = vld [vmem:[#allocation3 + $0x8] sm:$0xff]
  %v393 = vmul.f32 %v391, %v391
  %v394 = vmul.f32 %v392, %v392
  %v395 = vadd.f32 %v393, %v394
  %v396 = vrot.slane %v395, 4
  %v397 = vadd.f32 %v395, %v396
  %v398 = vrot.slane %v397, 2
  %v399 = vadd.f32 %v397, %v398
  %v400 = vrot.slane %v399, 1
  %v401 = vadd.f32 %v399, %v400
  %v402 = vrsqrt.pop %v401
  %v403 = vmul.f32 %v401, %v402
  %vm404 = vcmp.eq.f32.partialorder %v401, inf
  %v405 = vsel %vm404, %v401, %v403
  %vm406 = vcmp.eq.f32.partialorder %v401, 0.0
  %v407 = vand.u32 %v401, 2147483648
  %v408 = vsel %vm406, %v407, %v405
  %v409 = vmax.f32 %v408, 1e-08
  %v410 = vtanh.pop %v409
  %v411 = vrcp.pop %v409
  %v412 = vmul.f32 %v410, %v411
  %v413 = vmul.f32 %v412, %v391
  %v414 = vmul.f32 %v412, %v392
  %415 = vst [vmem:[%s2] sm:$0xff] %v413
  %416 = vst [vmem:[%s2 + $0x8] sm:$0xff] %v414
  %s417 = scalar_lea.vmem [#allocation2], 24
  %v418 = vld [vmem:[%s417] sm:$0xff]
  %v419 = vld [vmem:[%s417 + $0x8] sm:$0xff]
  %v420 = vld [vmem:[%s1] sm:$0xff]
  %v421 = vld [vmem:[%s1 + $0x8] sm:$0xff]
  %v422 = vld [vmem:[%s1 + $0x10] sm:$0xff]
  %v423 = vld [vmem:[%s1 + $0x18] sm:$0xff]
  %v424 = vld [vmem:[%s1 + $0x20] sm:$0xff]
  %v425 = vld [vmem:[%s1 + $0x28] sm:$0xff]
  %v426 = vld [vmem:[%s1 + $0x30] sm:$0xff]
  %v427 = vld [vmem:[%s1 + $0x38] sm:$0xff]
  %v429 = vsel %vm111, %v418, 0
  %v432 = vsel %vm111, %v419, 0
  %434 = vmatprep.subr.mxu0 0.0
  %435 = vmatpush1.msra.mxu0 %v420
  %436 = vmatprep.subr.mxu0 0.0
  %437 = vmatpush1.msra.mxu0 %v421
  %438 = vmatprep.subr.mxu0 0.0
  %439 = vmatpush1.msra.mxu0 %v422
  %440 = vmatprep.subr.mxu0 0.0
  %441 = vmatpush1.msra.mxu0 %v423
  %442 = vmatprep.subr.mxu0 0.0
  %443 = vmatpush1.msra.mxu0 %v424
  %444 = vmatprep.subr.mxu0 0.0
  %445 = vmatpush1.msra.mxu0 %v425
  %446 = vmatprep.subr.mxu0 0.0
  %447 = vmatpush1.msra.mxu0 %v426
  %448 = vmatprep.subr.mxu0 0.0
  %449 = vmatpush1.msra.mxu0 %v427
  %450 = vmatprep.subr.mxu0 0.0
  %451 = vmatpush1.msra.mxu0 0.0
  %452 = vmatprep.subr.mxu0 0.0
  %453 = vmatpush1.msra.mxu0 0.0
  %454 = vmatprep.subr.mxu0 0.0
  %455 = vmatpush1.msra.mxu0 0.0
  %456 = vmatprep.subr.mxu0 0.0
  %457 = vmatpush1.msra.mxu0 0.0
  %458 = vmatprep.subr.mxu0 0.0
  %459 = vmatpush1.msra.mxu0 0.0
  %460 = vmatprep.subr.mxu0 0.0
  %461 = vmatpush1.msra.mxu0 0.0
  %462 = vmatprep.subr.mxu0 0.0
  %463 = vmatpush1.msra.mxu0 0.0
  %464 = vmatprep.subr.mxu0 0.0
  %465 = vmatpush1.msra.mxu0 0.0
  %466 = vmatprep.subr.mxu0 0.0
  %467 = vmatpush1.msra.mxu0 0.0
  %468 = vmatprep.subr.mxu0 0.0
  %469 = vmatpush1.msra.mxu0 0.0
  %470 = vmatprep.subr.mxu0 0.0
  %471 = vmatpush1.msra.mxu0 0.0
  %472 = vmatprep.subr.mxu0 0.0
  %473 = vmatpush1.msra.mxu0 0.0
  %474 = vmatprep.subr.mxu0 0.0
  %475 = vmatpush1.msra.mxu0 0.0
  %476 = vmatprep.subr.mxu0 0.0
  %477 = vmatpush1.msra.mxu0 0.0
  %478 = vmatprep.subr.mxu0 0.0
  %479 = vmatpush1.msra.mxu0 0.0
  %480 = vmatprep.subr.mxu0 0.0
  %481 = vmatpush1.msra.mxu0 0.0
  %482 = vmatprep.subr.mxu0 0.0
  %483 = vmatpush1.msra.mxu0 0.0
  %484 = vmatprep.subr.mxu0 0.0
  %485 = vmatpush1.msra.mxu0 0.0
  %486 = vmatprep.subr.mxu0 0.0
  %487 = vmatpush1.msra.mxu0 0.0
  %488 = vmatprep.subr.mxu0 0.0
  %489 = vmatpush1.msra.mxu0 0.0
  %490 = vmatprep.subr.mxu0 0.0
  %491 = vmatpush1.msra.mxu0 0.0
  %492 = vmatprep.subr.mxu0 0.0
  %493 = vmatpush1.msra.mxu0 0.0
  %494 = vmatprep.subr.mxu0 0.0
  %495 = vmatpush1.msra.mxu0 0.0
  %496 = vmatprep.subr.mxu0 0.0
  %497 = vmatpush1.msra.mxu0 0.0
  %498 = vmatprep.mubr.f32.mxu0 0.0
  %499 = vmatmul.mubr.f32.gmra.mrb[0].mxu0 %v429
  %v500 = vpop.f32.mrb[0].mxu0
  %v501 = vadd.f32 0.0, %v500
  %v502 = vpop.f32.mrb[0].mxu0
  %503 = vmatprep.mubr.f32.mxu0 0.0
  %504 = vmatmul.mubr.f32.gmra.mrb[0].mxu0 %v432
  %v505 = vpop.f32.mrb[0].mxu0
  %v506 = vadd.f32 0.0, %v505
  %v507 = vpop.f32.mrb[0].mxu0
  %508 = vdwg.mxu0
  %509 = vst [vmem:[#allocation3] sm:$0xff] %v501
  %510 = vst [vmem:[#allocation3 + $0x8] sm:$0xff] %v506
  %v511 = vld [vmem:[#allocation3] sm:$0xff]
  %v512 = vld [vmem:[#allocation3 + $0x8] sm:$0xff]
  %v513 = vld [vmem:[%s417 + $0x1] sm:$0xff]
  %v514 = vld [vmem:[%s417 + $0x9] sm:$0xff]
  %v515 = vld [vmem:[%s199] sm:$0xff]
  %v516 = vld [vmem:[%s199 + $0x8] sm:$0xff]
  %v517 = vld [vmem:[%s199 + $0x10] sm:$0xff]
  %v518 = vld [vmem:[%s199 + $0x18] sm:$0xff]
  %v519 = vld [vmem:[%s199 + $0x20] sm:$0xff]
  %v520 = vld [vmem:[%s199 + $0x28] sm:$0xff]
  %v521 = vld [vmem:[%s199 + $0x30] sm:$0xff]
  %v522 = vld [vmem:[%s199 + $0x38] sm:$0xff]
  %v524 = vsel %vm111, %v513, 0
  %v527 = vsel %vm111, %v514, 0
  %529 = vmatprep.subr.mxu0 0.0
  %530 = vmatpush1.msra.mxu0 %v515
  %531 = vmatprep.subr.mxu0 0.0
  %532 = vmatpush1.msra.mxu0 %v516
  %533 = vmatprep.subr.mxu0 0.0
  %534 = vmatpush1.msra.mxu0 %v517
  %535 = vmatprep.subr.mxu0 0.0
  %536 = vmatpush1.msra.mxu0 %v518
  %537 = vmatprep.subr.mxu0 0.0
  %538 = vmatpush1.msra.mxu0 %v519
  %539 = vmatprep.subr.mxu0 0.0
  %540 = vmatpush1.msra.mxu0 %v520
  %541 = vmatprep.subr.mxu0 0.0
  %542 = vmatpush1.msra.mxu0 %v521
  %543 = vmatprep.subr.mxu0 0.0
  %544 = vmatpush1.msra.mxu0 %v522
  %545 = vmatprep.subr.mxu0 0.0
  %546 = vmatpush1.msra.mxu0 0.0
  %547 = vmatprep.subr.mxu0 0.0
  %548 = vmatpush1.msra.mxu0 0.0
  %549 = vmatprep.subr.mxu0 0.0
  %550 = vmatpush1.msra.mxu0 0.0
  %551 = vmatprep.subr.mxu0 0.0
  %552 = vmatpush1.msra.mxu0 0.0
  %553 = vmatprep.subr.mxu0 0.0
  %554 = vmatpush1.msra.mxu0 0.0
  %555 = vmatprep.subr.mxu0 0.0
  %556 = vmatpush1.msra.mxu0 0.0
  %557 = vmatprep.subr.mxu0 0.0
  %558 = vmatpush1.msra.mxu0 0.0
  %559 = vmatprep.subr.mxu0 0.0
  %560 = vmatpush1.msra.mxu0 0.0
  %561 = vmatprep.subr.mxu0 0.0
  %562 = vmatpush1.msra.mxu0 0.0
  %563 = vmatprep.subr.mxu0 0.0
  %564 = vmatpush1.msra.mxu0 0.0
  %565 = vmatprep.subr.mxu0 0.0
  %566 = vmatpush1.msra.mxu0 0.0
  %567 = vmatprep.subr.mxu0 0.0
  %568 = vmatpush1.msra.mxu0 0.0
  %569 = vmatprep.subr.mxu0 0.0
  %570 = vmatpush1.msra.mxu0 0.0
  %571 = vmatprep.subr.mxu0 0.0
  %572 = vmatpush1.msra.mxu0 0.0
  %573 = vmatprep.subr.mxu0 0.0
  %574 = vmatpush1.msra.mxu0 0.0
  %575 = vmatprep.subr.mxu0 0.0
  %576 = vmatpush1.msra.mxu0 0.0
  %577 = vmatprep.subr.mxu0 0.0
  %578 = vmatpush1.msra.mxu0 0.0
  %579 = vmatprep.subr.mxu0 0.0
  %580 = vmatpush1.msra.mxu0 0.0
  %581 = vmatprep.subr.mxu0 0.0
  %582 = vmatpush1.msra.mxu0 0.0
  %583 = vmatprep.subr.mxu0 0.0
  %584 = vmatpush1.msra.mxu0 0.0
  %585 = vmatprep.subr.mxu0 0.0
  %586 = vmatpush1.msra.mxu0 0.0
  %587 = vmatprep.subr.mxu0 0.0
  %588 = vmatpush1.msra.mxu0 0.0
  %589 = vmatprep.subr.mxu0 0.0
  %590 = vmatpush1.msra.mxu0 0.0
  %591 = vmatprep.subr.mxu0 0.0
  %592 = vmatpush1.msra.mxu0 0.0
  %593 = vmatprep.mubr.f32.mxu0 0.0
  %594 = vmatmul.mubr.f32.gmra.mrb[0].mxu0 %v524
  %v595 = vpop.f32.mrb[0].mxu0
  %v596 = vadd.f32 0.0, %v595
  %v597 = vpop.f32.mrb[0].mxu0
  %598 = vmatprep.mubr.f32.mxu0 0.0
  %599 = vmatmul.mubr.f32.gmra.mrb[0].mxu0 %v527
  %v600 = vpop.f32.mrb[0].mxu0
  %v601 = vadd.f32 0.0, %v600
  %v602 = vpop.f32.mrb[0].mxu0
  %603 = vdwg.mxu0
  %v604 = vadd.f32 %v511, %v596
  %v605 = vadd.f32 %v512, %v601
  %606 = vst [vmem:[#allocation3] sm:$0xff] %v604
  %607 = vst [vmem:[#allocation3 + $0x8] sm:$0xff] %v605
  %v608 = vld [vmem:[#allocation3] sm:$0xff]
  %v609 = vld [vmem:[#allocation3 + $0x8] sm:$0xff]
  %v610 = vld [vmem:[%s417 + $0x2] sm:$0xff]
  %v611 = vld [vmem:[%s417 + $0xa] sm:$0xff]
  %v612 = vld [vmem:[%s297] sm:$0xff]
  %v613 = vld [vmem:[%s297 + $0x8] sm:$0xff]
  %v614 = vld [vmem:[%s297 + $0x10] sm:$0xff]
  %v615 = vld [vmem:[%s297 + $0x18] sm:$0xff]
  %v616 = vld [vmem:[%s297 + $0x20] sm:$0xff]
  %v617 = vld [vmem:[%s297 + $0x28] sm:$0xff]
  %v618 = vld [vmem:[%s297 + $0x30] sm:$0xff]
  %v619 = vld [vmem:[%s297 + $0x38] sm:$0xff]
  %v621 = vsel %vm111, %v610, 0
  %v624 = vsel %vm111, %v611, 0
  %626 = vmatprep.subr.mxu0 0.0
  %627 = vmatpush1.msra.mxu0 %v612
  %628 = vmatprep.subr.mxu0 0.0
  %629 = vmatpush1.msra.mxu0 %v613
  %630 = vmatprep.subr.mxu0 0.0
  %631 = vmatpush1.msra.mxu0 %v614
  %632 = vmatprep.subr.mxu0 0.0
  %633 = vmatpush1.msra.mxu0 %v615
  %634 = vmatprep.subr.mxu0 0.0
  %635 = vmatpush1.msra.mxu0 %v616
  %636 = vmatprep.subr.mxu0 0.0
  %637 = vmatpush1.msra.mxu0 %v617
  %638 = vmatprep.subr.mxu0 0.0
  %639 = vmatpush1.msra.mxu0 %v618
  %640 = vmatprep.subr.mxu0 0.0
  %641 = vmatpush1.msra.mxu0 %v619
  %642 = vmatprep.subr.mxu0 0.0
  %643 = vmatpush1.msra.mxu0 0.0
  %644 = vmatprep.subr.mxu0 0.0
  %645 = vmatpush1.msra.mxu0 0.0
  %646 = vmatprep.subr.mxu0 0.0
  %647 = vmatpush1.msra.mxu0 0.0
  %648 = vmatprep.subr.mxu0 0.0
  %649 = vmatpush1.msra.mxu0 0.0
  %650 = vmatprep.subr.mxu0 0.0
  %651 = vmatpush1.msra.mxu0 0.0
  %652 = vmatprep.subr.mxu0 0.0
  %653 = vmatpush1.msra.mxu0 0.0
  %654 = vmatprep.subr.mxu0 0.0
  %655 = vmatpush1.msra.mxu0 0.0
  %656 = vmatprep.subr.mxu0 0.0
  %657 = vmatpush1.msra.mxu0 0.0
  %658 = vmatprep.subr.mxu0 0.0
  %659 = vmatpush1.msra.mxu0 0.0
  %660 = vmatprep.subr.mxu0 0.0
  %661 = vmatpush1.msra.mxu0 0.0
  %662 = vmatprep.subr.mxu0 0.0
  %663 = vmatpush1.msra.mxu0 0.0
  %664 = vmatprep.subr.mxu0 0.0
  %665 = vmatpush1.msra.mxu0 0.0
  %666 = vmatprep.subr.mxu0 0.0
  %667 = vmatpush1.msra.mxu0 0.0
  %668 = vmatprep.subr.mxu0 0.0
  %669 = vmatpush1.msra.mxu0 0.0
  %670 = vmatprep.subr.mxu0 0.0
  %671 = vmatpush1.msra.mxu0 0.0
  %672 = vmatprep.subr.mxu0 0.0
  %673 = vmatpush1.msra.mxu0 0.0
  %674 = vmatprep.subr.mxu0 0.0
  %675 = vmatpush1.msra.mxu0 0.0
  %676 = vmatprep.subr.mxu0 0.0
  %677 = vmatpush1.msra.mxu0 0.0
  %678 = vmatprep.subr.mxu0 0.0
  %679 = vmatpush1.msra.mxu0 0.0
  %680 = vmatprep.subr.mxu0 0.0
  %681 = vmatpush1.msra.mxu0 0.0
  %682 = vmatprep.subr.mxu0 0.0
  %683 = vmatpush1.msra.mxu0 0.0
  %684 = vmatprep.subr.mxu0 0.0
  %685 = vmatpush1.msra.mxu0 0.0
  %686 = vmatprep.subr.mxu0 0.0
  %687 = vmatpush1.msra.mxu0 0.0
  %688 = vmatprep.subr.mxu0 0.0
  %689 = vmatpush1.msra.mxu0 0.0
  %690 = vmatprep.mubr.f32.mxu0 0.0
  %691 = vmatmul.mubr.f32.gmra.mrb[0].mxu0 %v621
  %v692 = vpop.f32.mrb[0].mxu0
  %v693 = vadd.f32 0.0, %v692
  %v694 = vpop.f32.mrb[0].mxu0
  %695 = vmatprep.mubr.f32.mxu0 0.0
  %696 = vmatmul.mubr.f32.gmra.mrb[0].mxu0 %v624
  %v697 = vpop.f32.mrb[0].mxu0
  %v698 = vadd.f32 0.0, %v697
  %v699 = vpop.f32.mrb[0].mxu0
  %700 = vdwg.mxu0
  %v701 = vadd.f32 %v608, %v693
  %v702 = vadd.f32 %v609, %v698
  %703 = vst [vmem:[#allocation3] sm:$0xff] %v701
  %704 = vst [vmem:[#allocation3 + $0x8] sm:$0xff] %v702
  %v705 = vld [vmem:[#allocation3] sm:$0xff]
  %v706 = vld [vmem:[#allocation3 + $0x8] sm:$0xff]
  %v707 = vmul.f32 %v705, %v705
  %v708 = vmul.f32 %v706, %v706
  %v709 = vadd.f32 %v707, %v708
  %v710 = vrot.slane %v709, 4
  %v711 = vadd.f32 %v709, %v710
  %v712 = vrot.slane %v711, 2
  %v713 = vadd.f32 %v711, %v712
  %v714 = vrot.slane %v713, 1
  %v715 = vadd.f32 %v713, %v714
  %v716 = vrsqrt.pop %v715
  %v717 = vmul.f32 %v715, %v716
  %vm718 = vcmp.eq.f32.partialorder %v715, inf
  %v719 = vsel %vm718, %v715, %v717
  %vm720 = vcmp.eq.f32.partialorder %v715, 0.0
  %v721 = vand.u32 %v715, 2147483648
  %v722 = vsel %vm720, %v721, %v719
  %v723 = vmax.f32 %v722, 1e-08
  %v724 = vtanh.pop %v723
  %v725 = vrcp.pop %v723
  %v726 = vmul.f32 %v724, %v725
  %v727 = vmul.f32 %v726, %v705
  %v728 = vmul.f32 %v726, %v706
  %s729 = scalar_lea.vmem %s2, 16
  %730 = vst [vmem:[%s729] sm:$0xff] %v727
  %731 = vst [vmem:[%s729 + $0x8] sm:$0xff] %v728
  // Predicated region
  $region14: #{hyperbolic_conv2d.1} parent=0 // pred_check
    _
  $region15: #{hyperbolic_conv2d.1} parent=0 // pred_check_branch
    %733 = sbr.rel (0) target = $region17
  $region16: #{hyperbolic_conv2d.1} parent=0 // pred_region
    _
  $region17: #{hyperbolic_conv2d.1} parent=0 // pred_fallthru
    _
  // Predicated region
  $region18: #{hyperbolic_conv2d.1} parent=0 // pred_check
    _
  $region19: #{hyperbolic_conv2d.1} parent=0 // pred_check_branch
    %735 = sbr.rel (0) target = $region21
  $region20: #{hyperbolic_conv2d.1} parent=0 // pred_region
    _
  $region21: #{hyperbolic_conv2d.1} parent=0 // pred_fallthru
    _

</llo_original>
